<compile_context>
chip_gen: v5e
topology: v5e:2x2
jax: 0.10.0
libtpu: 0.0.40
codegen_flags: <defaults>
</compile_context>

<pallas_src>
import jax
import jax.numpy as jnp
from jax.experimental import pallas as pl
from jax.experimental.pallas import tpu as pltpu


def _layer_attn_kernel(mask_ref, x_ref, w_ref, o_ref):
    # mask_ref: (TB, 1, L)  float mask, 0.0 == masked-out position
    # x_ref:    (TB, L, H)  hidden states, native dtype (bf16 / f32)
    # w_ref:    (TB, 1, H)  attention_head weight, broadcast to TB, x dtype
    # o_ref:    (TB, H)     attended output
    x = x_ref[...]                                    # (TB, L, H), native dtype
    tb, _, h = x.shape[0], x.shape[1], x.shape[2]

    # attention_scores = Linear(hidden_states): MXU contraction over H with
    # f32 accumulation, lane-dense over L.  (nn.Linear's scalar bias is added
    # to every position and cancels exactly under softmax -> dropped.)
    scores = jnp.einsum("bqh,blh->bql", w_ref[...], x,
                        preferred_element_type=jnp.float32)      # (TB, 1, L)

    # masked_fill(attention_mask == 0, -1e9)
    scores = jnp.where(mask_ref[...] == 0.0, jnp.float32(-1e9), scores)

    # softmax over the sequence axis (the lane axis)
    m = jnp.max(scores, axis=-1, keepdims=True)                   # (TB, 1, 1)
    e = jnp.exp(scores - m)                                       # (TB, 1, L)
    p = e / jnp.sum(e, axis=-1, keepdims=True)                    # (TB, 1, L)

    # attended_states = sum_l weights * hidden_states  -> MXU contraction
    att = jnp.einsum("bql,blh->bqh", p.astype(x.dtype), x,
                     preferred_element_type=jnp.float32)          # (TB, 1, H)
    o_ref[...] = att.reshape(tb, h).astype(o_ref.dtype)           # (TB, H)


def _round_up(x, m):
    return ((x + m - 1) // m) * m


def _choose_tb(B, L, H, itemsize, target_bytes=4 << 20):
    """Batch-tile size: ~4 MiB hidden-state tile, multiple of 8 sublanes.

    4 MiB double-buffered stays well under every generation's scoped-VMEM
    budget (v5e 16 MiB default can be raised, v7x has 64 MiB physical).
    """
    row_bytes = max(1, L * H * itemsize)
    tb = max(8, (target_bytes // row_bytes) // 8 * 8)
    tb = min(tb, _round_up(B, 8))
    # Keep >= 2 grid steps when the batch allows it so v7x's two TensorCores
    # both get work along the 'parallel' grid axis.
    if B >= 16:
        tb = min(tb, max(8, (B // 2) // 8 * 8))
    return tb
    # TODO(synk): for very large L*H (tile >~12 MiB even at TB=8) add an inner
    # L-tile grid axis with flash-style online softmax instead of one L block.


def layer_attn(hidden_states, weight, bias, attention_mask=None):
    """Pallas implementation of LayerAttn.forward.

    hidden_states:  (B, L, H)
    weight:         (1, H)   nn.Linear(hidden_size, 1).weight
    bias:           (1,)     nn.Linear(hidden_size, 1).bias (cancels in softmax)
    attention_mask: (B, L) or None
    returns:        (B, H)
    """
    del bias  # softmax is invariant to the scalar bias shift
    B, L, H = hidden_states.shape
    dtype = hidden_states.dtype
    itemsize = jnp.dtype(dtype).itemsize

    if attention_mask is None:
        attention_mask = jnp.ones((B, L), dtype=jnp.int32)

    tb = _choose_tb(B, L, H, itemsize)
    Bp = _round_up(B, tb)
    pad = Bp - B

    # Mask as float, (B, 1, L) to line up with the lane-dense (TB, 1, L) scores.
    maskf = attention_mask.astype(jnp.float32).reshape(B, 1, L)
    x = hidden_states
    if pad:
        # Padded rows: zero hidden states + all-ones mask -> uniform softmax
        # over zeros, no NaNs; their outputs are sliced away below.
        x = jnp.pad(x, ((0, pad), (0, 0), (0, 0)))
        maskf = jnp.pad(maskf, ((0, pad), (0, 0), (0, 0)), constant_values=1.0)

    # Weight broadcast once on the host side to (TB, 1, H); it stays resident
    # in VMEM (index_map always returns block (0, 0, 0)).
    w3 = jnp.broadcast_to(weight.reshape(1, 1, H).astype(dtype), (tb, 1, H))

    out = pl.pallas_call(
        _layer_attn_kernel,
        out_shape=jax.ShapeDtypeStruct((Bp, H), dtype),
        grid_spec=pltpu.PrefetchScalarGridSpec(
            num_scalar_prefetch=0,
            grid=(Bp // tb,),
            in_specs=[
                pl.BlockSpec((tb, 1, L), lambda i: (i, 0, 0)),   # mask
                pl.BlockSpec((tb, L, H), lambda i: (i, 0, 0)),   # hidden states
                pl.BlockSpec((tb, 1, H), lambda i: (0, 0, 0)),   # weight (resident)
            ],
            out_specs=pl.BlockSpec((tb, H), lambda i: (i, 0)),
        ),
        compiler_params=pltpu.CompilerParams(
            dimension_semantics=("parallel",),
            # Safe on v5e/v6e/v7x; raises v5e's 16 MiB default scoped limit so
            # the ~4 MiB double-buffered tiles always fit.
            vmem_limit_bytes=32 * 1024 * 1024,
        ),
    )(maskf, x, w3)
    return out[:B]


def layer_attn_ref(hidden_states, weight, bias, attention_mask=None):
    """Plain-JAX reference mirroring the PyTorch forward (bias included)."""
    scores = jnp.einsum("blh,oh->blo", hidden_states, weight)[..., 0] + bias[0]
    if attention_mask is not None:
        scores = jnp.where(attention_mask == 0, -1e9, scores)
    w = jax.nn.softmax(scores, axis=-1)[..., None]
    return jnp.sum(w * hidden_states, axis=1)


if __name__ == "__main__":
    B, L, H = 2, 8, 32
    key = jax.random.PRNGKey(0)
    k_x, k_w, k_b, k_m = jax.random.split(key, 4)

    hidden_states = jax.random.normal(k_x, (B, L, H), dtype=jnp.float32)

    # Deterministic xavier_uniform-style init for nn.Linear(H, 1).weight and a
    # nonzero bias (to exercise the softmax shift-invariance in the kernel).
    fan_in, fan_out = H, 1
    limit = (6.0 / (fan_in + fan_out)) ** 0.5
    weight = jax.random.uniform(k_w, (1, H), minval=-limit, maxval=limit,
                                dtype=jnp.float32)
    bias = 0.1 * jax.random.normal(k_b, (1,), dtype=jnp.float32)

    # Mask with a couple of padded positions in each row.
    attention_mask = (jax.random.uniform(k_m, (B, L)) > 0.25).astype(jnp.int32)
    attention_mask = attention_mask.at[:, 0].set(1)   # keep at least one token

    out = layer_attn(hidden_states, weight, bias, attention_mask)
    out = jax.block_until_ready(out)

    ref = layer_attn_ref(hidden_states, weight, bias, attention_mask)
    assert out.shape == (B, H)
    assert jnp.allclose(out, ref, atol=1e-5, rtol=1e-5), "mismatch vs reference"

    print("KERNEL_OK")
</pallas_src>

<mosaic_0001>
module attributes {stable_mosaic.version = 11 : i64} {
  func.func @_layer_attn_kernel(%arg0: i32, %arg1: memref<8x1x8xf32, #tpu.memory_space<vmem>>, %arg2: memref<8x8x32xf32, #tpu.memory_space<vmem>>, %arg3: memref<8x1x32xf32, #tpu.memory_space<vmem>>, %arg4: memref<8x32xf32, #tpu.memory_space<vmem>>) attributes {dimension_semantics = [#tpu.dimension_semantics<parallel>], iteration_bounds = array<i64: 1>, scalar_prefetch = 0 : i64, scratch_operands = 0 : i64, tpu.core_type = #tpu.core_type<tc>, window_params = [{transform_indices = @transform_0, window_bounds = array<i64: 8, 1, 8>}, {transform_indices = @transform_1, window_bounds = array<i64: 8, 8, 32>}, {pipeline_mode = #tpu.pipeline_mode<synchronous>, transform_indices = @transform_2, window_bounds = array<i64: 8, 1, 32>}, {transform_indices = @transform_3, window_bounds = array<i64: 8, 32>}]} {
    %c0 = arith.constant 0 : index
    %c0_0 = arith.constant 0 : index
    %c0_1 = arith.constant 0 : index
    %0 = vector.load %arg2[%c0, %c0_0, %c0_1] : memref<8x8x32xf32, #tpu.memory_space<vmem>>, vector<8x8x32xf32>
    %c0_2 = arith.constant 0 : index
    %c0_3 = arith.constant 0 : index
    %c0_4 = arith.constant 0 : index
    %1 = vector.load %arg3[%c0_2, %c0_3, %c0_4] : memref<8x1x32xf32, #tpu.memory_space<vmem>>, vector<8x1x32xf32>
    "tpu.trace_start"() <{level = 10 : i32, message = "bqh,blh->bql"}> : () -> ()
    %cst = arith.constant dense<0.000000e+00> : vector<8x1x8xf32>
    %2 = tpu.matmul %1, %0, %cst {dimension_numbers = #tpu.dot_dimension_numbers<[2], [2], [1], [1], [0, 0, 0, 1, 1, 1], [0], [0]>} : vector<8x1x32xf32>, vector<8x8x32xf32>, vector<8x1x8xf32> -> vector<8x1x8xf32>
    "tpu.trace_stop"() : () -> ()
    %c0_5 = arith.constant 0 : index
    %c0_6 = arith.constant 0 : index
    %c0_7 = arith.constant 0 : index
    %3 = vector.load %arg1[%c0_5, %c0_6, %c0_7] : memref<8x1x8xf32, #tpu.memory_space<vmem>>, vector<8x1x8xf32>
    %cst_8 = arith.constant 0.000000e+00 : f32
    %4 = vector.broadcast %cst_8 : f32 to vector<8x1x8xf32>
    %5 = arith.cmpf oeq, %3, %4 : vector<8x1x8xf32>
    %cst_9 = arith.constant -1.000000e+09 : f32
    %6 = vector.broadcast %cst_9 : f32 to vector<8x1x8xf32>
    %7 = arith.select %5, %6, %2 : vector<8x1x8xi1>, vector<8x1x8xf32>
    %cst_10 = arith.constant dense<0xFF800000> : vector<8x1xf32>
    %8 = vector.multi_reduction <maximumf>, %7, %cst_10 [2] : vector<8x1x8xf32> to vector<8x1xf32>
    %9 = vector.shape_cast %8 : vector<8x1xf32> to vector<8x1x1xf32>
    %10 = vector.broadcast %9 : vector<8x1x1xf32> to vector<8x1x8xf32>
    %11 = arith.subf %7, %10 : vector<8x1x8xf32>
    %12 = math.exp %11 : vector<8x1x8xf32>
    %cst_11 = arith.constant dense<0.000000e+00> : vector<8x1xf32>
    %13 = vector.multi_reduction <add>, %12, %cst_11 [2] : vector<8x1x8xf32> to vector<8x1xf32>
    %14 = vector.shape_cast %13 : vector<8x1xf32> to vector<8x1x1xf32>
    %15 = vector.broadcast %14 : vector<8x1x1xf32> to vector<8x1x8xf32>
    %16 = arith.divf %12, %15 : vector<8x1x8xf32>
    "tpu.trace_start"() <{level = 10 : i32, message = "bql,blh->bqh"}> : () -> ()
    %cst_12 = arith.constant dense<0.000000e+00> : vector<8x1x32xf32>
    %17 = tpu.matmul %16, %0, %cst_12 {dimension_numbers = #tpu.dot_dimension_numbers<[2], [1], [1], [2], [0, 0, 0, 1, 1, 2], [0], [0]>} : vector<8x1x8xf32>, vector<8x8x32xf32>, vector<8x1x32xf32> -> vector<8x1x32xf32>
    "tpu.trace_stop"() : () -> ()
    %18 = vector.shape_cast %17 : vector<8x1x32xf32> to vector<8x32xf32>
    %c0_13 = arith.constant 0 : index
    %c0_14 = arith.constant 0 : index
    %19 = vector.load %arg4[%c0_13, %c0_14] : memref<8x32xf32, #tpu.memory_space<vmem>>, vector<8x32xf32>
    tpu.vector_store %arg4[%c0_13, %c0_14], %18 {strides = array<i32>} : memref<8x32xf32, #tpu.memory_space<vmem>>, vector<8x32xf32>,
    return
  }
  func.func @transform_0(%arg0: i32) -> (i32, i32, i32) {
    %c0_i32 = arith.constant 0 : i32
    %c0_i32_0 = arith.constant 0 : i32
    %c0_i32_1 = arith.constant 0 : i32
    return %arg0, %c0_i32, %c0_i32_0 : i32, i32, i32
  }
  func.func @transform_1(%arg0: i32) -> (i32, i32, i32) {
    %c0_i32 = arith.constant 0 : i32
    %c0_i32_0 = arith.constant 0 : i32
    %c0_i32_1 = arith.constant 0 : i32
    return %arg0, %c0_i32, %c0_i32_0 : i32, i32, i32
  }
  func.func @transform_2(%arg0: i32) -> (i32, i32, i32) {
    %c0_i32 = arith.constant 0 : i32
    %c0_i32_0 = arith.constant 0 : i32
    %c0_i32_1 = arith.constant 0 : i32
    %c0_i32_2 = arith.constant 0 : i32
    return %c0_i32, %c0_i32_0, %c0_i32_1 : i32, i32, i32
  }
  func.func @transform_3(%arg0: i32) -> (i32, i32) {
    %c0_i32 = arith.constant 0 : i32
    %c0_i32_0 = arith.constant 0 : i32
    return %arg0, %c0_i32 : i32, i32
  }
}

</mosaic_0001>

<llo_original>
// kernel: tpu_custom_call.1
$region0: #{tpu_custom_call.1}
  #allocation0 [shape = 'u32[]', space=smem, size = 0x4, offset = 0x4, fixed_abs, tag = 'smem constant byte address 0x4 - core index']
  #allocation1 [shape = 'u32[72,128]{1,0:T(1,128)}', space=vmem, size = 0x9000, scoped, tag = 'internal scratch']
  %s0 = inlined_call_operand.hbm [shape: f32[8,1,8], index: 0, kind: input, shape index: {}]
  %s1 = inlined_call_operand.hbm [shape: f32[8,8,32], index: 1, kind: input, shape index: {}]
  %s2 = inlined_call_operand.hbm [shape: f32[8,1,32], index: 2, kind: input, shape index: {}]
  %s3 = inlined_call_operand.hbm [shape: f32[8,32], index: 3, kind: output, shape index: {}]
  %s4 = sld [smem:[#allocation0]]
  $region34: #{tpu_custom_call.1} parent=0
    _
  %s6 = ssub.s32 1, %s4
  %s7 = scalar_select 0, %s6, %s4
  $region1: #{tpu_custom_call.1} parent=0
    #allocation2 [shape = 'u8[4096]{0}', space=vmem, size = 0x1000, scoped, tag = 'input window, operand 0, single buffered']
    #allocation3 [shape = 's32[1]{0}', space=sflag, size = 0x4, scoped, tag = 'scoped memory for tpu_custom_call.1']
    #allocation4 [shape = 's32[1]{0}', space=sflag, size = 0x4, scoped, tag = 'scoped memory for tpu_custom_call.1']
    #allocation5 [shape = 'u8[32768]{0}', space=vmem, size = 0x8000, scoped, tag = 'input window, operand 1, single buffered']
    #allocation6 [shape = 's32[1]{0}', space=sflag, size = 0x4, scoped, tag = 'scoped memory for tpu_custom_call.1']
    #allocation7 [shape = 'u8[4096]{0}', space=vmem, size = 0x1000, scoped, tag = 'input window, operand 2, single buffered']
    #allocation8 [shape = 'u8[4096]{0}', space=vmem, size = 0x1000, scoped, tag = 'output window, operand 0, single buffered']
    %8 = vsyncpa [#allocation3], 0
    %9 = vsyncpa [#allocation6], 0
    %10 = vsyncpa [#allocation4], 0
    // Predicated region
    $region2: #{tpu_custom_call.1} parent=1 // pred_check
      _
    $region3: #{tpu_custom_call.1} parent=1 // pred_check_branch
      %12 = sbr.rel (0) target = $region5
    $region4: #{tpu_custom_call.1} parent=1 // pred_region
      %14 = vsyncadd [#allocation3], 0
      %s15 = sshll.u32 %s0, 4
      %s16 = int_to_ptr.hbm [resolvable:$true] %s15
      %s17 = sshll.u32 [#allocation2], 4
      %s18 = int_to_ptr.vmem [resolvable:$true] %s17
      %23 = dma.hbm_to_vmem [thread:$0]  %s16, 128, %s18, [#allocation3], 16, 16, 1
    $region5: #{tpu_custom_call.1} parent=1 // pred_fallthru
      _
    // Predicated region
    $region6: #{tpu_custom_call.1} parent=1 // pred_check
      _
    $region7: #{tpu_custom_call.1} parent=1 // pred_check_branch
      %25 = sbr.rel (0) target = $region9
    $region8: #{tpu_custom_call.1} parent=1 // pred_region
      %27 = vsyncadd [#allocation6], 0
      %s28 = sshll.u32 %s1, 4
      %s29 = int_to_ptr.hbm [resolvable:$true] %s28
      %s30 = sshll.u32 [#allocation5], 4
      %s31 = int_to_ptr.vmem [resolvable:$true] %s30
      %36 = dma.hbm_to_vmem [thread:$0]  %s29, 1024, %s31, [#allocation6], 128, 128, 8
    $region9: #{tpu_custom_call.1} parent=1 // pred_fallthru
      _
    // Predicated region
    $region10: #{tpu_custom_call.1} parent=1 // pred_check
      _
    $region11: #{tpu_custom_call.1} parent=1 // pred_check_branch
      %38 = sbr.rel (0) target = $region13
    $region12: #{tpu_custom_call.1} parent=1 // pred_region
      %40 = vsyncadd [#allocation6], 0
      %s41 = sshll.u32 %s2, 4
      %s42 = int_to_ptr.hbm [resolvable:$true] %s41
      %s43 = sshll.u32 [#allocation7], 4
      %s44 = int_to_ptr.vmem [resolvable:$true] %s43
      %49 = dma.hbm_to_vmem [thread:$0]  %s42, 128, %s44, [#allocation6], 16, 16, 1
    $region13: #{tpu_custom_call.1} parent=1 // pred_fallthru
      _
    // Predicated region
    $region14: #{tpu_custom_call.1} parent=1 // pred_check
      _
    $region15: #{tpu_custom_call.1} parent=1 // pred_check_branch
      %51 = sbr.rel (0) target = $region17
    $region16: #{tpu_custom_call.1} parent=1 // pred_region
      %53 = dma.done [#allocation3], 128
    $region17: #{tpu_custom_call.1} parent=1 // pred_fallthru
      _
    // Predicated region
    $region18: #{tpu_custom_call.1} parent=1 // pred_check
      _
    $region19: #{tpu_custom_call.1} parent=1 // pred_check_branch
      %55 = sbr.rel (0) target = $region21
    $region20: #{tpu_custom_call.1} parent=1 // pred_region
      %57 = dma.done [#allocation6], 1024
    $region21: #{tpu_custom_call.1} parent=1 // pred_fallthru
      _
    // Predicated region
    $region22: #{tpu_custom_call.1} parent=1 // pred_check
      _
    $region23: #{tpu_custom_call.1} parent=1 // pred_check_branch
      %59 = sbr.rel (0) target = $region25
    $region24: #{tpu_custom_call.1} parent=1 // pred_region
      %61 = dma.done [#allocation6], 128
    $region25: #{tpu_custom_call.1} parent=1 // pred_fallthru
      _
    %v62 = vld [vmem:[#allocation5] sm:$0xff]
    %v63 = vld [vmem:[#allocation5 + $0x8] sm:$0xff]
    %v64 = vld [vmem:[#allocation5 + $0x10] sm:$0xff]
    %v65 = vld [vmem:[#allocation5 + $0x18] sm:$0xff]
    %v66 = vld [vmem:[#allocation5 + $0x20] sm:$0xff]
    %v67 = vld [vmem:[#allocation5 + $0x28] sm:$0xff]
    %v68 = vld [vmem:[#allocation5 + $0x30] sm:$0xff]
    %v69 = vld [vmem:[#allocation5 + $0x38] sm:$0xff]
    %v70 = vld [vmem:[#allocation7] sm:$0x1]
    %v71 = vld [vmem:[#allocation7 + $0x1] sm:$0x1]
    %v72 = vld [vmem:[#allocation7 + $0x2] sm:$0x1]
    %v73 = vld [vmem:[#allocation7 + $0x3] sm:$0x1]
    %v74 = vld [vmem:[#allocation7 + $0x4] sm:$0x1]
    %v75 = vld [vmem:[#allocation7 + $0x5] sm:$0x1]
    %v76 = vld [vmem:[#allocation7 + $0x6] sm:$0x1]
    %v77 = vld [vmem:[#allocation7 + $0x7] sm:$0x1]
    %vm78 = vcmask 261120
    %v80 = vsel %vm78, %v70, 0
    %v83 = vsel %vm78, %v62, 0
    %85 = vmatpush.xpose.msra.mxu0 0.0
    %86 = vmatpush.xpose.msra.mxu0 0.0
    %87 = vmatpush.xpose.msra.mxu0 0.0
    %88 = vmatpush.xpose.msra.mxu0 0.0
    %89 = vmatpush.xpose.msra.mxu0 0.0
    %90 = vmatpush.xpose.msra.mxu0 0.0
    %91 = vmatpush.xpose.msra.mxu0 0.0
    %92 = vmatpush.xpose.msra.mxu0 0.0
    %93 = vmatpush.xpose.msra.mxu0 0.0
    %94 = vmatpush.xpose.msra.mxu0 0.0
    %95 = vmatpush.xpose.msra.mxu0 0.0
    %96 = vmatpush.xpose.msra.mxu0 0.0
    %97 = vmatpush.xpose.msra.mxu0 0.0
    %98 = vmatpush.xpose.msra.mxu0 0.0
    %99 = vmatpush.xpose.msra.mxu0 0.0
    %100 = vmatpush.xpose.msra.mxu0 %v83
    %101 = vmatmul.f32.gmra.mxu0 %v80
    %v102 = vpop.f32.mrf.mxu0
    %v103 = vadd.f32 0.0, %v102
    %104 = vdwg.mxu0
    %v106 = vsel %vm78, %v71, 0
    %v109 = vsel %vm78, %v63, 0
    %111 = vmatpush.xpose.msra.mxu0 0.0
    %112 = vmatpush.xpose.msra.mxu0 0.0
    %113 = vmatpush.xpose.msra.mxu0 0.0
    %114 = vmatpush.xpose.msra.mxu0 0.0
    %115 = vmatpush.xpose.msra.mxu0 0.0
    %116 = vmatpush.xpose.msra.mxu0 0.0
    %117 = vmatpush.xpose.msra.mxu0 0.0
    %118 = vmatpush.xpose.msra.mxu0 0.0
    %119 = vmatpush.xpose.msra.mxu0 0.0
    %120 = vmatpush.xpose.msra.mxu0 0.0
    %121 = vmatpush.xpose.msra.mxu0 0.0
    %122 = vmatpush.xpose.msra.mxu0 0.0
    %123 = vmatpush.xpose.msra.mxu0 0.0
    %124 = vmatpush.xpose.msra.mxu0 0.0
    %125 = vmatpush.xpose.msra.mxu0 0.0
    %126 = vmatpush.xpose.msra.mxu0 %v109
    %127 = vmatmul.f32.gmra.mxu0 %v106
    %v128 = vpop.f32.mrf.mxu0
    %v129 = vadd.f32 0.0, %v128
    %130 = vdwg.mxu0
    %v132 = vsel %vm78, %v72, 0
    %v135 = vsel %vm78, %v64, 0
    %137 = vmatpush.xpose.msra.mxu0 0.0
    %138 = vmatpush.xpose.msra.mxu0 0.0
    %139 = vmatpush.xpose.msra.mxu0 0.0
    %140 = vmatpush.xpose.msra.mxu0 0.0
    %141 = vmatpush.xpose.msra.mxu0 0.0
    %142 = vmatpush.xpose.msra.mxu0 0.0
    %143 = vmatpush.xpose.msra.mxu0 0.0
    %144 = vmatpush.xpose.msra.mxu0 0.0
    %145 = vmatpush.xpose.msra.mxu0 0.0
    %146 = vmatpush.xpose.msra.mxu0 0.0
    %147 = vmatpush.xpose.msra.mxu0 0.0
    %148 = vmatpush.xpose.msra.mxu0 0.0
    %149 = vmatpush.xpose.msra.mxu0 0.0
    %150 = vmatpush.xpose.msra.mxu0 0.0
    %151 = vmatpush.xpose.msra.mxu0 0.0
    %152 = vmatpush.xpose.msra.mxu0 %v135
    %153 = vmatmul.f32.gmra.mxu0 %v132
    %v154 = vpop.f32.mrf.mxu0
    %v155 = vadd.f32 0.0, %v154
    %156 = vdwg.mxu0
    %v158 = vsel %vm78, %v73, 0
    %v161 = vsel %vm78, %v65, 0
    %163 = vmatpush.xpose.msra.mxu0 0.0
    %164 = vmatpush.xpose.msra.mxu0 0.0
    %165 = vmatpush.xpose.msra.mxu0 0.0
    %166 = vmatpush.xpose.msra.mxu0 0.0
    %167 = vmatpush.xpose.msra.mxu0 0.0
    %168 = vmatpush.xpose.msra.mxu0 0.0
    %169 = vmatpush.xpose.msra.mxu0 0.0
    %170 = vmatpush.xpose.msra.mxu0 0.0
    %171 = vmatpush.xpose.msra.mxu0 0.0
    %172 = vmatpush.xpose.msra.mxu0 0.0
    %173 = vmatpush.xpose.msra.mxu0 0.0
    %174 = vmatpush.xpose.msra.mxu0 0.0
    %175 = vmatpush.xpose.msra.mxu0 0.0
    %176 = vmatpush.xpose.msra.mxu0 0.0
    %177 = vmatpush.xpose.msra.mxu0 0.0
    %178 = vmatpush.xpose.msra.mxu0 %v161
    %179 = vmatmul.f32.gmra.mxu0 %v158
    %v180 = vpop.f32.mrf.mxu0
    %v181 = vadd.f32 0.0, %v180
    %182 = vdwg.mxu0
    %v184 = vsel %vm78, %v74, 0
    %v187 = vsel %vm78, %v66, 0
    %189 = vmatpush.xpose.msra.mxu0 0.0
    %190 = vmatpush.xpose.msra.mxu0 0.0
    %191 = vmatpush.xpose.msra.mxu0 0.0
    %192 = vmatpush.xpose.msra.mxu0 0.0
    %193 = vmatpush.xpose.msra.mxu0 0.0
    %194 = vmatpush.xpose.msra.mxu0 0.0
    %195 = vmatpush.xpose.msra.mxu0 0.0
    %196 = vmatpush.xpose.msra.mxu0 0.0
    %197 = vmatpush.xpose.msra.mxu0 0.0
    %198 = vmatpush.xpose.msra.mxu0 0.0
    %199 = vmatpush.xpose.msra.mxu0 0.0
    %200 = vmatpush.xpose.msra.mxu0 0.0
    %201 = vmatpush.xpose.msra.mxu0 0.0
    %202 = vmatpush.xpose.msra.mxu0 0.0
    %203 = vmatpush.xpose.msra.mxu0 0.0
    %204 = vmatpush.xpose.msra.mxu0 %v187
    %205 = vmatmul.f32.gmra.mxu0 %v184
    %v206 = vpop.f32.mrf.mxu0
    %v207 = vadd.f32 0.0, %v206
    %208 = vdwg.mxu0
    %v210 = vsel %vm78, %v75, 0
    %v213 = vsel %vm78, %v67, 0
    %215 = vmatpush.xpose.msra.mxu0 0.0
    %216 = vmatpush.xpose.msra.mxu0 0.0
    %217 = vmatpush.xpose.msra.mxu0 0.0
    %218 = vmatpush.xpose.msra.mxu0 0.0
    %219 = vmatpush.xpose.msra.mxu0 0.0
    %220 = vmatpush.xpose.msra.mxu0 0.0
    %221 = vmatpush.xpose.msra.mxu0 0.0
    %222 = vmatpush.xpose.msra.mxu0 0.0
    %223 = vmatpush.xpose.msra.mxu0 0.0
    %224 = vmatpush.xpose.msra.mxu0 0.0
    %225 = vmatpush.xpose.msra.mxu0 0.0
    %226 = vmatpush.xpose.msra.mxu0 0.0
    %227 = vmatpush.xpose.msra.mxu0 0.0
    %228 = vmatpush.xpose.msra.mxu0 0.0
    %229 = vmatpush.xpose.msra.mxu0 0.0
    %230 = vmatpush.xpose.msra.mxu0 %v213
    %231 = vmatmul.f32.gmra.mxu0 %v210
    %v232 = vpop.f32.mrf.mxu0
    %v233 = vadd.f32 0.0, %v232
    %234 = vdwg.mxu0
    %v236 = vsel %vm78, %v76, 0
    %v239 = vsel %vm78, %v68, 0
    %241 = vmatpush.xpose.msra.mxu0 0.0
    %242 = vmatpush.xpose.msra.mxu0 0.0
    %243 = vmatpush.xpose.msra.mxu0 0.0
    %244 = vmatpush.xpose.msra.mxu0 0.0
    %245 = vmatpush.xpose.msra.mxu0 0.0
    %246 = vmatpush.xpose.msra.mxu0 0.0
    %247 = vmatpush.xpose.msra.mxu0 0.0
    %248 = vmatpush.xpose.msra.mxu0 0.0
    %249 = vmatpush.xpose.msra.mxu0 0.0
    %250 = vmatpush.xpose.msra.mxu0 0.0
    %251 = vmatpush.xpose.msra.mxu0 0.0
    %252 = vmatpush.xpose.msra.mxu0 0.0
    %253 = vmatpush.xpose.msra.mxu0 0.0
    %254 = vmatpush.xpose.msra.mxu0 0.0
    %255 = vmatpush.xpose.msra.mxu0 0.0
    %256 = vmatpush.xpose.msra.mxu0 %v239
    %257 = vmatmul.f32.gmra.mxu0 %v236
    %v258 = vpop.f32.mrf.mxu0
    %v259 = vadd.f32 0.0, %v258
    %260 = vdwg.mxu0
    %v262 = vsel %vm78, %v77, 0
    %v265 = vsel %vm78, %v69, 0
    %267 = vmatpush.xpose.msra.mxu0 0.0
    %268 = vmatpush.xpose.msra.mxu0 0.0
    %269 = vmatpush.xpose.msra.mxu0 0.0
    %270 = vmatpush.xpose.msra.mxu0 0.0
    %271 = vmatpush.xpose.msra.mxu0 0.0
    %272 = vmatpush.xpose.msra.mxu0 0.0
    %273 = vmatpush.xpose.msra.mxu0 0.0
    %274 = vmatpush.xpose.msra.mxu0 0.0
    %275 = vmatpush.xpose.msra.mxu0 0.0
    %276 = vmatpush.xpose.msra.mxu0 0.0
    %277 = vmatpush.xpose.msra.mxu0 0.0
    %278 = vmatpush.xpose.msra.mxu0 0.0
    %279 = vmatpush.xpose.msra.mxu0 0.0
    %280 = vmatpush.xpose.msra.mxu0 0.0
    %281 = vmatpush.xpose.msra.mxu0 0.0
    %282 = vmatpush.xpose.msra.mxu0 %v265
    %283 = vmatmul.f32.gmra.mxu0 %v262
    %v284 = vpop.f32.mrf.mxu0
    %v285 = vadd.f32 0.0, %v284
    %286 = vdwg.mxu0
    %v287 = vld [vmem:[#allocation2] sm:$0x1]
    %v288 = vld [vmem:[#allocation2 + $0x1] sm:$0x1]
    %v289 = vld [vmem:[#allocation2 + $0x2] sm:$0x1]
    %v290 = vld [vmem:[#allocation2 + $0x3] sm:$0x1]
    %v291 = vld [vmem:[#allocation2 + $0x4] sm:$0x1]
    %v292 = vld [vmem:[#allocation2 + $0x5] sm:$0x1]
    %v293 = vld [vmem:[#allocation2 + $0x6] sm:$0x1]
    %v294 = vld [vmem:[#allocation2 + $0x7] sm:$0x1]
    %vm295 = vcmp.eq.f32.partialorder %v287, 0.0
    %vm296 = vcmp.eq.f32.partialorder %v288, 0.0
    %vm297 = vcmp.eq.f32.partialorder %v289, 0.0
    %vm298 = vcmp.eq.f32.partialorder %v290, 0.0
    %vm299 = vcmp.eq.f32.partialorder %v291, 0.0
    %vm300 = vcmp.eq.f32.partialorder %v292, 0.0
    %vm301 = vcmp.eq.f32.partialorder %v293, 0.0
    %vm302 = vcmp.eq.f32.partialorder %v294, 0.0
    %v303 = vsel %vm295, -1e+09, %v103
    %v304 = vsel %vm296, -1e+09, %v129
    %v305 = vsel %vm297, -1e+09, %v155
    %v306 = vsel %vm298, -1e+09, %v181
    %v307 = vsel %vm299, -1e+09, %v207
    %v308 = vsel %vm300, -1e+09, %v233
    %v309 = vsel %vm301, -1e+09, %v259
    %v310 = vsel %vm302, -1e+09, %v285
    %vm311 = vcmask 57344
    %v312 = vsel %vm311, %v303, -inf
    %313 = vmax.xlane.f32.xlu0 %v312
    %v314 = vpop.xlane.xlu0 %313
    %v315 = vsel %vm311, %v304, -inf
    %316 = vmax.xlane.f32.xlu0 %v315
    %v317 = vpop.xlane.xlu0 %316
    %v318 = vsel %vm311, %v305, -inf
    %319 = vmax.xlane.f32.xlu0 %v318
    %v320 = vpop.xlane.xlu0 %319
    %v321 = vsel %vm311, %v306, -inf
    %322 = vmax.xlane.f32.xlu0 %v321
    %v323 = vpop.xlane.xlu0 %322
    %v324 = vsel %vm311, %v307, -inf
    %325 = vmax.xlane.f32.xlu0 %v324
    %v326 = vpop.xlane.xlu0 %325
    %v327 = vsel %vm311, %v308, -inf
    %328 = vmax.xlane.f32.xlu0 %v327
    %v329 = vpop.xlane.xlu0 %328
    %v330 = vsel %vm311, %v309, -inf
    %331 = vmax.xlane.f32.xlu0 %v330
    %v332 = vpop.xlane.xlu0 %331
    %v333 = vsel %vm311, %v310, -inf
    %334 = vmax.xlane.f32.xlu0 %v333
    %v335 = vpop.xlane.xlu0 %334
    %v336 = vsub.f32 %v303, %v314
    %v337 = vsub.f32 %v304, %v317
    %v338 = vsub.f32 %v305, %v320
    %v339 = vsub.f32 %v306, %v323
    %v340 = vsub.f32 %v307, %v326
    %v341 = vsub.f32 %v308, %v329
    %v342 = vsub.f32 %v309, %v332
    %v343 = vsub.f32 %v310, %v335
    %v344 = vmul.f32 %v336, 1.442695
    %v345 = vpow.pop %v344
    %v346 = vmul.f32 %v337, 1.442695
    %v347 = vpow.pop %v346
    %v348 = vmul.f32 %v338, 1.442695
    %v349 = vpow.pop %v348
    %v350 = vmul.f32 %v339, 1.442695
    %v351 = vpow.pop %v350
    %v352 = vmul.f32 %v340, 1.442695
    %v353 = vpow.pop %v352
    %v354 = vmul.f32 %v341, 1.442695
    %v355 = vpow.pop %v354
    %v356 = vmul.f32 %v342, 1.442695
    %v357 = vpow.pop %v356
    %v358 = vmul.f32 %v343, 1.442695
    %v359 = vpow.pop %v358
    %v360 = vsel %vm311, %v345, 0.0
    %361 = vadd.xlane.f32.xlu0 %v360
    %v362 = vpop.xlane.xlu0 %361
    %v363 = vsel %vm311, %v347, 0.0
    %364 = vadd.xlane.f32.xlu0 %v363
    %v365 = vpop.xlane.xlu0 %364
    %v366 = vsel %vm311, %v349, 0.0
    %367 = vadd.xlane.f32.xlu0 %v366
    %v368 = vpop.xlane.xlu0 %367
    %v369 = vsel %vm311, %v351, 0.0
    %370 = vadd.xlane.f32.xlu0 %v369
    %v371 = vpop.xlane.xlu0 %370
    %v372 = vsel %vm311, %v353, 0.0
    %373 = vadd.xlane.f32.xlu0 %v372
    %v374 = vpop.xlane.xlu0 %373
    %v375 = vsel %vm311, %v355, 0.0
    %376 = vadd.xlane.f32.xlu0 %v375
    %v377 = vpop.xlane.xlu0 %376
    %v378 = vsel %vm311, %v357, 0.0
    %379 = vadd.xlane.f32.xlu0 %v378
    %v380 = vpop.xlane.xlu0 %379
    %v381 = vsel %vm311, %v359, 0.0
    %382 = vadd.xlane.f32.xlu0 %v381
    %v383 = vpop.xlane.xlu0 %382
    %v384 = vrcp.pop %v362
    %v385 = vmul.f32 %v362, %v384
    %v386 = vsub.f32 1.0, %v385
    %v387 = vmul.f32 %v384, %v386
    %v388 = vadd.f32 %v384, %v387
    %vm389 = vweird.f32 %v362
    %vm390 = vweird.f32 %v384
    %vm391 = vmor %vm389, %vm390
    %v392 = vsel %vm391, %v384, %v388
    %v393 = vand.u32 2147483647, %v362
    %vm394 = vcmp.eq.f32.partialorder %v393, 8.507059e+37
    %v395 = vand.u32 %v362, 2147483648
    %v396 = vor.u32 1.1754944e-38, %v395
    %v397 = vsel %vm394, %v396, %v392
    %v398 = vmul.f32 %v345, %v397
    %v399 = vrcp.pop %v365
    %v400 = vmul.f32 %v365, %v399
    %v401 = vsub.f32 1.0, %v400
    %v402 = vmul.f32 %v399, %v401
    %v403 = vadd.f32 %v399, %v402
    %vm404 = vweird.f32 %v365
    %vm405 = vweird.f32 %v399
    %vm406 = vmor %vm404, %vm405
    %v407 = vsel %vm406, %v399, %v403
    %v408 = vand.u32 2147483647, %v365
    %vm409 = vcmp.eq.f32.partialorder %v408, 8.507059e+37
    %v410 = vand.u32 %v365, 2147483648
    %v411 = vor.u32 1.1754944e-38, %v410
    %v412 = vsel %vm409, %v411, %v407
    %v413 = vmul.f32 %v347, %v412
    %v414 = vrcp.pop %v368
    %v415 = vmul.f32 %v368, %v414
    %v416 = vsub.f32 1.0, %v415
    %v417 = vmul.f32 %v414, %v416
    %v418 = vadd.f32 %v414, %v417
    %vm419 = vweird.f32 %v368
    %vm420 = vweird.f32 %v414
    %vm421 = vmor %vm419, %vm420
    %v422 = vsel %vm421, %v414, %v418
    %v423 = vand.u32 2147483647, %v368
    %vm424 = vcmp.eq.f32.partialorder %v423, 8.507059e+37
    %v425 = vand.u32 %v368, 2147483648
    %v426 = vor.u32 1.1754944e-38, %v425
    %v427 = vsel %vm424, %v426, %v422
    %v428 = vmul.f32 %v349, %v427
    %v429 = vrcp.pop %v371
    %v430 = vmul.f32 %v371, %v429
    %v431 = vsub.f32 1.0, %v430
    %v432 = vmul.f32 %v429, %v431
    %v433 = vadd.f32 %v429, %v432
    %vm434 = vweird.f32 %v371
    %vm435 = vweird.f32 %v429
    %vm436 = vmor %vm434, %vm435
    %v437 = vsel %vm436, %v429, %v433
    %v438 = vand.u32 2147483647, %v371
    %vm439 = vcmp.eq.f32.partialorder %v438, 8.507059e+37
    %v440 = vand.u32 %v371, 2147483648
    %v441 = vor.u32 1.1754944e-38, %v440
    %v442 = vsel %vm439, %v441, %v437
    %v443 = vmul.f32 %v351, %v442
    %v444 = vrcp.pop %v374
    %v445 = vmul.f32 %v374, %v444
    %v446 = vsub.f32 1.0, %v445
    %v447 = vmul.f32 %v444, %v446
    %v448 = vadd.f32 %v444, %v447
    %vm449 = vweird.f32 %v374
    %vm450 = vweird.f32 %v444
    %vm451 = vmor %vm449, %vm450
    %v452 = vsel %vm451, %v444, %v448
    %v453 = vand.u32 2147483647, %v374
    %vm454 = vcmp.eq.f32.partialorder %v453, 8.507059e+37
    %v455 = vand.u32 %v374, 2147483648
    %v456 = vor.u32 1.1754944e-38, %v455
    %v457 = vsel %vm454, %v456, %v452
    %v458 = vmul.f32 %v353, %v457
    %v459 = vrcp.pop %v377
    %v460 = vmul.f32 %v377, %v459
    %v461 = vsub.f32 1.0, %v460
    %v462 = vmul.f32 %v459, %v461
    %v463 = vadd.f32 %v459, %v462
    %vm464 = vweird.f32 %v377
    %vm465 = vweird.f32 %v459
    %vm466 = vmor %vm464, %vm465
    %v467 = vsel %vm466, %v459, %v463
    %v468 = vand.u32 2147483647, %v377
    %vm469 = vcmp.eq.f32.partialorder %v468, 8.507059e+37
    %v470 = vand.u32 %v377, 2147483648
    %v471 = vor.u32 1.1754944e-38, %v470
    %v472 = vsel %vm469, %v471, %v467
    %v473 = vmul.f32 %v355, %v472
    %v474 = vrcp.pop %v380
    %v475 = vmul.f32 %v380, %v474
    %v476 = vsub.f32 1.0, %v475
    %v477 = vmul.f32 %v474, %v476
    %v478 = vadd.f32 %v474, %v477
    %vm479 = vweird.f32 %v380
    %vm480 = vweird.f32 %v474
    %vm481 = vmor %vm479, %vm480
    %v482 = vsel %vm481, %v474, %v478
    %v483 = vand.u32 2147483647, %v380
    %vm484 = vcmp.eq.f32.partialorder %v483, 8.507059e+37
    %v485 = vand.u32 %v380, 2147483648
    %v486 = vor.u32 1.1754944e-38, %v485
    %v487 = vsel %vm484, %v486, %v482
    %v488 = vmul.f32 %v357, %v487
    %v489 = vrcp.pop %v383
    %v490 = vmul.f32 %v383, %v489
    %v491 = vsub.f32 1.0, %v490
    %v492 = vmul.f32 %v489, %v491
    %v493 = vadd.f32 %v489, %v492
    %vm494 = vweird.f32 %v383
    %vm495 = vweird.f32 %v489
    %vm496 = vmor %vm494, %vm495
    %v497 = vsel %vm496, %v489, %v493
    %v498 = vand.u32 2147483647, %v383
    %vm499 = vcmp.eq.f32.partialorder %v498, 8.507059e+37
    %v500 = vand.u32 %v383, 2147483648
    %v501 = vor.u32 1.1754944e-38, %v500
    %v502 = vsel %vm499, %v501, %v497
    %v503 = vmul.f32 %v359, %v502
    %vm504 = vcmask 64512
    %v506 = vsel %vm504, %v398, 0
    %508 = vmatpush.msra.mxu0 0.0
    %509 = vmatpush.msra.mxu0 0.0
    %510 = vmatpush.msra.mxu0 0.0
    %511 = vmatpush.msra.mxu0 0.0
    %512 = vmatpush.msra.mxu0 0.0
    %513 = vmatpush.msra.mxu0 0.0
    %514 = vmatpush.msra.mxu0 0.0
    %515 = vmatpush.msra.mxu0 0.0
    %516 = vmatpush.msra.mxu0 0.0
    %517 = vmatpush.msra.mxu0 0.0
    %518 = vmatpush.msra.mxu0 0.0
    %519 = vmatpush.msra.mxu0 0.0
    %520 = vmatpush.msra.mxu0 0.0
    %521 = vmatpush.msra.mxu0 0.0
    %522 = vmatpush.msra.mxu0 0.0
    %523 = vmatpush.msra.mxu0 %v62
    %524 = vmatmul.f32.gmra.mxu0 %v506
    %v525 = vpop.f32.mrf.mxu0
    %v526 = vadd.f32 0.0, %v525
    %527 = vdwg.mxu0
    %v529 = vsel %vm504, %v413, 0
    %531 = vmatpush.msra.mxu0 0.0
    %532 = vmatpush.msra.mxu0 0.0
    %533 = vmatpush.msra.mxu0 0.0
    %534 = vmatpush.msra.mxu0 0.0
    %535 = vmatpush.msra.mxu0 0.0
    %536 = vmatpush.msra.mxu0 0.0
    %537 = vmatpush.msra.mxu0 0.0
    %538 = vmatpush.msra.mxu0 0.0
    %539 = vmatpush.msra.mxu0 0.0
    %540 = vmatpush.msra.mxu0 0.0
    %541 = vmatpush.msra.mxu0 0.0
    %542 = vmatpush.msra.mxu0 0.0
    %543 = vmatpush.msra.mxu0 0.0
    %544 = vmatpush.msra.mxu0 0.0
    %545 = vmatpush.msra.mxu0 0.0
    %546 = vmatpush.msra.mxu0 %v63
    %547 = vmatmul.f32.gmra.mxu0 %v529
    %v548 = vpop.f32.mrf.mxu0
    %v549 = vadd.f32 0.0, %v548
    %550 = vdwg.mxu0
    %v552 = vsel %vm504, %v428, 0
    %554 = vmatpush.msra.mxu0 0.0
    %555 = vmatpush.msra.mxu0 0.0
    %556 = vmatpush.msra.mxu0 0.0
    %557 = vmatpush.msra.mxu0 0.0
    %558 = vmatpush.msra.mxu0 0.0
    %559 = vmatpush.msra.mxu0 0.0
    %560 = vmatpush.msra.mxu0 0.0
    %561 = vmatpush.msra.mxu0 0.0
    %562 = vmatpush.msra.mxu0 0.0
    %563 = vmatpush.msra.mxu0 0.0
    %564 = vmatpush.msra.mxu0 0.0
    %565 = vmatpush.msra.mxu0 0.0
    %566 = vmatpush.msra.mxu0 0.0
    %567 = vmatpush.msra.mxu0 0.0
    %568 = vmatpush.msra.mxu0 0.0
    %569 = vmatpush.msra.mxu0 %v64
    %570 = vmatmul.f32.gmra.mxu0 %v552
    %v571 = vpop.f32.mrf.mxu0
    %v572 = vadd.f32 0.0, %v571
    %573 = vdwg.mxu0
    %v575 = vsel %vm504, %v443, 0
    %577 = vmatpush.msra.mxu0 0.0
    %578 = vmatpush.msra.mxu0 0.0
    %579 = vmatpush.msra.mxu0 0.0
    %580 = vmatpush.msra.mxu0 0.0
    %581 = vmatpush.msra.mxu0 0.0
    %582 = vmatpush.msra.mxu0 0.0
    %583 = vmatpush.msra.mxu0 0.0
    %584 = vmatpush.msra.mxu0 0.0
    %585 = vmatpush.msra.mxu0 0.0
    %586 = vmatpush.msra.mxu0 0.0
    %587 = vmatpush.msra.mxu0 0.0
    %588 = vmatpush.msra.mxu0 0.0
    %589 = vmatpush.msra.mxu0 0.0
    %590 = vmatpush.msra.mxu0 0.0
    %591 = vmatpush.msra.mxu0 0.0
    %592 = vmatpush.msra.mxu0 %v65
    %593 = vmatmul.f32.gmra.mxu0 %v575
    %v594 = vpop.f32.mrf.mxu0
    %v595 = vadd.f32 0.0, %v594
    %596 = vdwg.mxu0
    %v598 = vsel %vm504, %v458, 0
    %600 = vmatpush.msra.mxu0 0.0
    %601 = vmatpush.msra.mxu0 0.0
    %602 = vmatpush.msra.mxu0 0.0
    %603 = vmatpush.msra.mxu0 0.0
    %604 = vmatpush.msra.mxu0 0.0
    %605 = vmatpush.msra.mxu0 0.0
    %606 = vmatpush.msra.mxu0 0.0
    %607 = vmatpush.msra.mxu0 0.0
    %608 = vmatpush.msra.mxu0 0.0
    %609 = vmatpush.msra.mxu0 0.0
    %610 = vmatpush.msra.mxu0 0.0
    %611 = vmatpush.msra.mxu0 0.0
    %612 = vmatpush.msra.mxu0 0.0
    %613 = vmatpush.msra.mxu0 0.0
    %614 = vmatpush.msra.mxu0 0.0
    %615 = vmatpush.msra.mxu0 %v66
    %616 = vmatmul.f32.gmra.mxu0 %v598
    %v617 = vpop.f32.mrf.mxu0
    %v618 = vadd.f32 0.0, %v617
    %619 = vdwg.mxu0
    %v621 = vsel %vm504, %v473, 0
    %623 = vmatpush.msra.mxu0 0.0
    %624 = vmatpush.msra.mxu0 0.0
    %625 = vmatpush.msra.mxu0 0.0
    %626 = vmatpush.msra.mxu0 0.0
    %627 = vmatpush.msra.mxu0 0.0
    %628 = vmatpush.msra.mxu0 0.0
    %629 = vmatpush.msra.mxu0 0.0
    %630 = vmatpush.msra.mxu0 0.0
    %631 = vmatpush.msra.mxu0 0.0
    %632 = vmatpush.msra.mxu0 0.0
    %633 = vmatpush.msra.mxu0 0.0
    %634 = vmatpush.msra.mxu0 0.0
    %635 = vmatpush.msra.mxu0 0.0
    %636 = vmatpush.msra.mxu0 0.0
    %637 = vmatpush.msra.mxu0 0.0
    %638 = vmatpush.msra.mxu0 %v67
    %639 = vmatmul.f32.gmra.mxu0 %v621
    %v640 = vpop.f32.mrf.mxu0
    %v641 = vadd.f32 0.0, %v640
    %642 = vdwg.mxu0
    %v644 = vsel %vm504, %v488, 0
    %646 = vmatpush.msra.mxu0 0.0
    %647 = vmatpush.msra.mxu0 0.0
    %648 = vmatpush.msra.mxu0 0.0
    %649 = vmatpush.msra.mxu0 0.0
    %650 = vmatpush.msra.mxu0 0.0
    %651 = vmatpush.msra.mxu0 0.0
    %652 = vmatpush.msra.mxu0 0.0
    %653 = vmatpush.msra.mxu0 0.0
    %654 = vmatpush.msra.mxu0 0.0
    %655 = vmatpush.msra.mxu0 0.0
    %656 = vmatpush.msra.mxu0 0.0
    %657 = vmatpush.msra.mxu0 0.0
    %658 = vmatpush.msra.mxu0 0.0
    %659 = vmatpush.msra.mxu0 0.0
    %660 = vmatpush.msra.mxu0 0.0
    %661 = vmatpush.msra.mxu0 %v68
    %662 = vmatmul.f32.gmra.mxu0 %v644
    %v663 = vpop.f32.mrf.mxu0
    %v664 = vadd.f32 0.0, %v663
    %665 = vdwg.mxu0
    %v667 = vsel %vm504, %v503, 0
    %669 = vmatpush.msra.mxu0 0.0
    %670 = vmatpush.msra.mxu0 0.0
    %671 = vmatpush.msra.mxu0 0.0
    %672 = vmatpush.msra.mxu0 0.0
    %673 = vmatpush.msra.mxu0 0.0
    %674 = vmatpush.msra.mxu0 0.0
    %675 = vmatpush.msra.mxu0 0.0
    %676 = vmatpush.msra.mxu0 0.0
    %677 = vmatpush.msra.mxu0 0.0
    %678 = vmatpush.msra.mxu0 0.0
    %679 = vmatpush.msra.mxu0 0.0
    %680 = vmatpush.msra.mxu0 0.0
    %681 = vmatpush.msra.mxu0 0.0
    %682 = vmatpush.msra.mxu0 0.0
    %683 = vmatpush.msra.mxu0 0.0
    %684 = vmatpush.msra.mxu0 %v69
    %685 = vmatmul.f32.gmra.mxu0 %v667
    %v686 = vpop.f32.mrf.mxu0
    %v687 = vadd.f32 0.0, %v686
    %688 = vdwg.mxu0
    %v697 = vrot.slane %v549, 7
    %vm698 = vcmask 1041409
    %v699 = vsel %vm698, %v697, %v526
    %v700 = vrot.slane %v572, 6
    %vm701 = vcmask 1042434
    %v702 = vsel %vm701, %v700, %v699
    %v703 = vrot.slane %v595, 5
    %vm704 = vcmask 1043459
    %v705 = vsel %vm704, %v703, %v702
    %v706 = vrot.slane %v618, 4
    %vm707 = vcmask 1044484
    %v708 = vsel %vm707, %v706, %v705
    %v709 = vrot.slane %v641, 3
    %vm710 = vcmask 1045509
    %v711 = vsel %vm710, %v709, %v708
    %v712 = vrot.slane %v664, 2
    %vm713 = vcmask 1046534
    %v714 = vsel %vm713, %v712, %v711
    %v715 = vrot.slane %v687, 1
    %vm716 = vcmask 1047559
    %v717 = vsel %vm716, %v715, %v714
    %719 = vst.msk [vmem:[#allocation8] sm:$0xff] %vm78, %v717
    // Predicated region
    $region26: #{tpu_custom_call.1} parent=1 // pred_check
      _
    $region27: #{tpu_custom_call.1} parent=1 // pred_check_branch
      %721 = sbr.rel (0) target = $region29
    $region28: #{tpu_custom_call.1} parent=1 // pred_region
      %723 = vsyncadd [#allocation4], 0
      %s725 = sshll.u32 [#allocation8], 4
      %s726 = int_to_ptr.vmem [resolvable:$true] %s725
      %s727 = sshll.u32 %s3, 4
      %s728 = int_to_ptr.hbm [resolvable:$true] %s727
      %730 = dma.vmem_to_hbm [thread:$0]  %s726, 128, %s728, [#allocation4]
    $region29: #{tpu_custom_call.1} parent=1 // pred_fallthru
      _
    // Predicated region
    $region30: #{tpu_custom_call.1} parent=1 // pred_check
      _
    $region31: #{tpu_custom_call.1} parent=1 // pred_check_branch
      %732 = sbr.rel (0) target = $region33
    $region32: #{tpu_custom_call.1} parent=1 // pred_region
      %734 = dma.done [#allocation4], 128
    $region33: #{tpu_custom_call.1} parent=1 // pred_fallthru
      _
    %735 = vsyncpa [#allocation3], 1
    %736 = vsyncpa [#allocation6], 1
    %737 = vsyncpa [#allocation4], 1

</llo_original>
